<compile_context>
chip_gen: v7x
topology: tpu7x:2x2x1
jax: 0.10.0
libtpu: 0.0.40
codegen_flags: <defaults>
</compile_context>

<pallas_src>
import numpy as np
import jax
import jax.numpy as jnp
from jax.experimental import pallas as pl
from jax.experimental.pallas import tpu as pltpu

COST_CLASS = 1.0
COST_POINT = 1.0


def _round_up(x, m):
    return ((x + m - 1) // m) * m


def _pick_tile(extent, max_tile, align):
    """Largest divisor of `extent` that is a multiple of `align` and <= max_tile."""
    best = align
    d = align
    while d <= min(extent, max_tile):
        if extent % d == 0:
            best = d
        d += align
    return best


# ---------------------------------------------------------------------------
# Pallas kernel: one (query-tile x target-tile) block of one image's cost
# matrix.  2-class softmax via tanh, class-cost blend against the target-class
# row, pre-scaled absolute coords, exact euclidean distance — all weights
# folded into the small [tq,1] / [2,tt] operands so the per-element work is
# 8 VALU ops + 1 sqrt (EUP) + 1 store.  No MXU use.
# ---------------------------------------------------------------------------
def _cost_kernel(scale_ref, logits_ref, points_ref, cls_ref, tgtp_ref, c_ref):
    # scale_ref : SMEM (2,) = (img_h*cost_point, img_w*cost_point)
    # logits_ref: [tq, 2]   points_ref: [tq, 2]
    # cls_ref   : [1, tt]   tgtp_ref  : [2, tt] (already * cost_point)
    # c_ref     : [tq, tt]
    logits = logits_ref[...]
    d = logits[:, 1:2] - logits[:, 0:1]                       # [tq, 1]

    # softmax over 2 classes: p1 - p0 = tanh(d/2), p0 = 0.5*(1 - tanh(d/2))
    t = jnp.tanh(0.5 * d)                                     # [tq, 1]
    a = (-0.5 * COST_CLASS) * (1.0 - t)                       # -cost_class * p0
    b = (-COST_CLASS) * t                                     # -cost_class * (p1 - p0)
    class_term = a + b * cls_ref[...]                         # [tq, tt]

    # absolute, cost_point-weighted coords (scale from SMEM scalars)
    px = points_ref[:, 0:1] * scale_ref[0]                    # [tq, 1]
    py = points_ref[:, 1:2] * scale_ref[1]                    # [tq, 1]

    # exact euclidean cdist; cost_point already folded into both operands
    dx = px - tgtp_ref[0:1, :]                                # [tq, tt]
    dy = py - tgtp_ref[1:2, :]                                # [tq, tt]
    c_ref[...] = jnp.sqrt(dx * dx + dy * dy) + class_term


def compute_cost_matrix(pred_logits, pred_points, cls_padded, tgtp_padded, img_shape,
                        *, tq_max=512, tt_max=1024):
    """Per-image (block-diagonal) cost matrices.

    pred_logits : [bs, nq, 2]   pred_points : [bs, nq, 2]
    cls_padded  : [bs, 1, Tp]   target class (0/1) per image, zero-padded
    tgtp_padded : [bs, 2, Tp]   target coords^T per image, already * COST_POINT
    Returns the padded C of shape [bs, nq_pad, Tp] (float32).  The caller slices
    C[i, :nq, :size_i] on the host; padded entries hold finite garbage.
    """
    bs, nq, _ = pred_logits.shape
    Tp = int(cls_padded.shape[-1])
    assert Tp > 0 and Tp % 128 == 0

    nq_pad = _round_up(nq, 8)
    tq = _pick_tile(nq_pad, tq_max, 8)
    tt = _pick_tile(Tp, tt_max, 128)
    # Guarantee >=2 blocks on a parallel axis so the v7x 2-TC megacore splits.
    if bs == 1 and (nq_pad // tq) == 1 and (Tp // tt) == 1 and nq_pad >= 16:
        tq = _pick_tile(nq_pad, nq_pad // 2, 8)

    logits = pred_logits.astype(jnp.float32)
    points = pred_points.astype(jnp.float32)
    if nq_pad != nq:
        pad = ((0, 0), (0, nq_pad - nq), (0, 0))
        logits = jnp.pad(logits, pad)
        points = jnp.pad(points, pad)

    img_h, img_w = img_shape
    scale = jnp.asarray([float(img_h) * COST_POINT, float(img_w) * COST_POINT],
                        dtype=jnp.float32)                    # lives in SMEM

    grid = (bs, nq_pad // tq, Tp // tt)

    cost_estimate = pl.CostEstimate(
        flops=int(9 * bs * nq_pad * Tp),
        transcendentals=int(bs * nq_pad * Tp + bs * nq_pad),
        bytes_accessed=int(4 * (bs * nq_pad * Tp + 4 * bs * nq_pad + 3 * bs * Tp) + 8),
    )

    return pl.pallas_call(
        _cost_kernel,
        out_shape=jax.ShapeDtypeStruct((bs, nq_pad, Tp), jnp.float32),
        grid_spec=pltpu.PrefetchScalarGridSpec(
            num_scalar_prefetch=0,
            grid=grid,
            in_specs=[
                pl.BlockSpec(memory_space=pltpu.MemorySpace.SMEM),         # scale (2,)
                pl.BlockSpec((None, tq, 2), lambda b, i, j: (b, i, 0)),    # logits tile
                pl.BlockSpec((None, tq, 2), lambda b, i, j: (b, i, 0)),    # points tile
                pl.BlockSpec((None, 1, tt), lambda b, i, j: (b, 0, j)),    # class row
                pl.BlockSpec((None, 2, tt), lambda b, i, j: (b, 0, j)),    # tgt points^T
            ],
            out_specs=pl.BlockSpec((None, tq, tt), lambda b, i, j: (b, i, j)),
        ),
        compiler_params=pltpu.CompilerParams(
            dimension_semantics=("parallel", "parallel", "parallel")),
        cost_estimate=cost_estimate,
    )(scale, logits, points, cls_padded, tgtp_padded)


def pack_targets(targets, Tp):
    """Per-image, lane-padded target class row [bs,1,Tp] and coords^T [bs,2,Tp]."""
    bs = len(targets)
    cls_padded = np.zeros((bs, 1, Tp), dtype=np.float32)
    tgtp_padded = np.zeros((bs, 2, Tp), dtype=np.float32)
    for b, t in enumerate(targets):
        pts = np.asarray(t["points"], dtype=np.float32)
        n = int(pts.shape[0])
        if n == 0:
            continue
        cls_padded[b, 0, :n] = np.asarray(t["labels"], dtype=np.float32)
        tgtp_padded[b, :, :n] = pts.T * COST_POINT            # fold cost_point here
    return jnp.asarray(cls_padded), jnp.asarray(tgtp_padded)


# ---------------------------------------------------------------------------
# Host-side rectangular Hungarian (Jonker-Volgenant), replacement for
# scipy.optimize.linear_sum_assignment.
# TODO(synk): the assignment itself is an inherently serial host algorithm;
# it has no clean Pallas equivalent and runs in NumPy on the kernel's output.
# ---------------------------------------------------------------------------
def linear_sum_assignment_np(cost):
    cost = np.asarray(cost, dtype=np.float64)
    transposed = cost.shape[0] > cost.shape[1]
    if transposed:
        cost = cost.T
    n, m = cost.shape  # n <= m
    INF = float("inf")
    u = np.zeros(n + 1)
    v = np.zeros(m + 1)
    p = np.zeros(m + 1, dtype=np.int64)
    way = np.zeros(m + 1, dtype=np.int64)
    for i in range(1, n + 1):
        p[0] = i
        j0 = 0
        minv = np.full(m + 1, INF)
        used = np.zeros(m + 1, dtype=bool)
        while True:
            used[j0] = True
            i0 = p[j0]
            delta = INF
            j1 = 0
            for j in range(1, m + 1):
                if not used[j]:
                    cur = cost[i0 - 1, j - 1] - u[i0] - v[j]
                    if cur < minv[j]:
                        minv[j] = cur
                        way[j] = j0
                    if minv[j] < delta:
                        delta = minv[j]
                        j1 = j
            for j in range(m + 1):
                if used[j]:
                    u[p[j]] += delta
                    v[j] -= delta
                else:
                    minv[j] -= delta
            j0 = j1
            if p[j0] == 0:
                break
        while j0:
            j1 = way[j0]
            p[j0] = p[j1]
            j0 = j1
    rows, cols = [], []
    for j in range(1, m + 1):
        if p[j] != 0:
            rows.append(p[j] - 1)
            cols.append(j - 1)
    rows = np.asarray(rows, dtype=np.int64)
    cols = np.asarray(cols, dtype=np.int64)
    if transposed:
        rows, cols = cols, rows
    order = np.argsort(rows)
    return rows[order], cols[order]


def hungarian_matcher(outputs, targets):
    """Mirror of HungarianMatcher.forward (cost_class=1, cost_point=1)."""
    pred_logits = outputs["pred_logits"]
    pred_points = outputs["pred_points"]
    img_shape = outputs["img_shape"]
    bs, nq = pred_logits.shape[:2]

    sizes = [int(np.asarray(t["points"]).shape[0]) for t in targets]
    if sum(sizes) == 0:  # degenerate: no ground-truth points anywhere
        empty = np.zeros((0,), dtype=np.int64)
        return [(empty, empty) for _ in range(bs)]

    Tp = _round_up(max(sizes), 128)
    cls_padded, tgtp_padded = pack_targets(targets, Tp)

    C = compute_cost_matrix(pred_logits, pred_points, cls_padded, tgtp_padded, img_shape)
    C = np.asarray(jax.block_until_ready(C))                  # [bs, nq_pad, Tp]

    indices = []
    for b, sz in enumerate(sizes):
        cb = C[b, :nq, :sz]                                   # padded cols never reach Hungarian
        indices.append(linear_sum_assignment_np(cb))
    return [(np.asarray(i, dtype=np.int64), np.asarray(j, dtype=np.int64))
            for i, j in indices]


# ---------------------------------------------------------------------------
# Pure NumPy reference for the full cost matrix (validation of the kernel).
# ---------------------------------------------------------------------------
def cost_matrix_ref(pred_logits, pred_points, tgt_ids, tgt_points, img_shape):
    logits = np.asarray(pred_logits, np.float64).reshape(-1, 2)
    points = np.asarray(pred_points, np.float64).reshape(-1, 2)
    tgt_ids = np.asarray(tgt_ids)
    tgt_points = np.asarray(tgt_points, np.float64)
    e = np.exp(logits - logits.max(-1, keepdims=True))
    prob = e / e.sum(-1, keepdims=True)
    cost_class = -prob[:, tgt_ids]
    pts_abs = points.copy()
    pts_abs[:, 0] *= img_shape[0]
    pts_abs[:, 1] *= img_shape[1]
    diff = pts_abs[:, None, :] - tgt_points[None, :, :]
    cost_point = np.sqrt((diff ** 2).sum(-1))
    C = COST_POINT * cost_point + COST_CLASS * cost_class
    return C.reshape(pred_logits.shape[0], pred_logits.shape[1], -1)


if __name__ == "__main__":
    bs, nq = 2, 8
    img_h, img_w = 128.0, 192.0
    sizes = [3, 4]

    key = jax.random.PRNGKey(0)
    k1, k2, k3, k4 = jax.random.split(key, 4)

    pred_logits = jax.random.normal(k1, (bs, nq, 2), dtype=jnp.float32)
    pred_points = jax.random.uniform(k2, (bs, nq, 2), dtype=jnp.float32)

    targets = []
    pkeys = jax.random.split(k3, bs)
    lkeys = jax.random.split(k4, bs)
    for b in range(bs):
        n = sizes[b]
        pts = jax.random.uniform(pkeys[b], (n, 2), dtype=jnp.float32) \
            * jnp.asarray([img_h, img_w], dtype=jnp.float32)
        lbl = jax.random.randint(lkeys[b], (n,), 0, 2, dtype=jnp.int32)
        targets.append({"labels": lbl, "points": pts})

    outputs = {"pred_logits": pred_logits,
               "pred_points": pred_points,
               "img_shape": (img_h, img_w)}

    # Run the Pallas kernel once and validate per-image blocks vs the NumPy ref.
    Tp = _round_up(max(sizes), 128)
    cls_padded, tgtp_padded = pack_targets(targets, Tp)
    C_kernel = compute_cost_matrix(pred_logits, pred_points, cls_padded, tgtp_padded,
                                   (img_h, img_w))
    C_kernel = np.asarray(jax.block_until_ready(C_kernel))    # [bs, nq_pad, Tp]

    tgt_ids = jnp.concatenate([t["labels"] for t in targets])
    tgt_points = jnp.concatenate([t["points"] for t in targets])
    C_ref = cost_matrix_ref(pred_logits, pred_points, tgt_ids, tgt_points,
                            (img_h, img_w))                   # [bs, nq, sum(sizes)]

    offset = 0
    for b, sz in enumerate(sizes):
        np.testing.assert_allclose(C_kernel[b, :nq, :sz],
                                   C_ref[b, :, offset:offset + sz],
                                   rtol=1e-4, atol=1e-4)
        offset += sz

    # Full matcher (kernel + host Hungarian), mirroring the module's output.
    matches = hungarian_matcher(outputs, targets)
    for b, (i, j) in enumerate(matches):
        assert len(i) == len(j) == min(nq, sizes[b])

    print("KERNEL_OK")
</pallas_src>

<mosaic_0001>
module attributes {stable_mosaic.version = 11 : i64} {
  func.func @_cost_kernel(%arg0: i32, %arg1: i32, %arg2: i32, %arg3: memref<2xf32, #tpu.memory_space<smem>>, %arg4: memref<1x8x2xf32, #tpu.memory_space<vmem>>, %arg5: memref<1x8x2xf32, #tpu.memory_space<vmem>>, %arg6: memref<1x1x128xf32, #tpu.memory_space<vmem>>, %arg7: memref<1x2x128xf32, #tpu.memory_space<vmem>>, %arg8: memref<1x8x128xf32, #tpu.memory_space<vmem>>) attributes {dimension_semantics = [#tpu.dimension_semantics<parallel>, #tpu.dimension_semantics<parallel>, #tpu.dimension_semantics<parallel>], iteration_bounds = array<i64: 2, 1, 1>, scalar_prefetch = 0 : i64, scratch_operands = 0 : i64, tpu.core_type = #tpu.core_type<tc>, window_params = [{transform_indices = @transform_0, window_bounds = array<i64: 2>}, {transform_indices = @transform_1, window_bounds = array<i64: 1, 8, 2>}, {transform_indices = @transform_2, window_bounds = array<i64: 1, 8, 2>}, {transform_indices = @transform_3, window_bounds = array<i64: 1, 1, 128>}, {transform_indices = @transform_4, window_bounds = array<i64: 1, 2, 128>}, {transform_indices = @transform_5, window_bounds = array<i64: 1, 8, 128>}]} {
    %c0 = arith.constant 0 : index
    %c0_0 = arith.constant 0 : index
    %c0_1 = arith.constant 0 : index
    %0 = vector.load %arg4[%c0, %c0_0, %c0_1] : memref<1x8x2xf32, #tpu.memory_space<vmem>>, vector<1x8x2xf32>
    %1 = vector.shape_cast %0 : vector<1x8x2xf32> to vector<8x2xf32>
    %2 = vector.extract_strided_slice %1 {offsets = [0, 1], sizes = [8, 1], strides = [1, 1]} : vector<8x2xf32> to vector<8x1xf32>
    %3 = vector.extract_strided_slice %1 {offsets = [0, 0], sizes = [8, 1], strides = [1, 1]} : vector<8x2xf32> to vector<8x1xf32>
    %4 = arith.subf %2, %3 : vector<8x1xf32>
    %cst = arith.constant 5.000000e-01 : f32
    %5 = vector.broadcast %cst : f32 to vector<8x1xf32>
    %6 = arith.mulf %5, %4 : vector<8x1xf32>
    %7 = math.tanh %6 : vector<8x1xf32>
    %cst_2 = arith.constant 1.000000e+00 : f32
    %8 = vector.broadcast %cst_2 : f32 to vector<8x1xf32>
    %9 = arith.subf %8, %7 : vector<8x1xf32>
    %cst_3 = arith.constant -5.000000e-01 : f32
    %10 = vector.broadcast %cst_3 : f32 to vector<8x1xf32>
    %11 = arith.mulf %10, %9 : vector<8x1xf32>
    %cst_4 = arith.constant -1.000000e+00 : f32
    %12 = vector.broadcast %cst_4 : f32 to vector<8x1xf32>
    %13 = arith.mulf %12, %7 : vector<8x1xf32>
    %c0_5 = arith.constant 0 : index
    %c0_6 = arith.constant 0 : index
    %c0_7 = arith.constant 0 : index
    %14 = vector.load %arg6[%c0_5, %c0_6, %c0_7] : memref<1x1x128xf32, #tpu.memory_space<vmem>>, vector<1x1x128xf32>
    %15 = vector.shape_cast %14 : vector<1x1x128xf32> to vector<1x128xf32>
    %16 = vector.broadcast %13 : vector<8x1xf32> to vector<8x128xf32>
    %17 = vector.broadcast %15 : vector<1x128xf32> to vector<8x128xf32>
    %18 = arith.mulf %16, %17 : vector<8x128xf32>
    %19 = vector.broadcast %11 : vector<8x1xf32> to vector<8x128xf32>
    %20 = arith.addf %19, %18 : vector<8x128xf32>
    %c0_8 = arith.constant 0 : index
    %c0_9 = arith.constant 0 : index
    %c0_10 = arith.constant 0 : index
    %21 = vector.load %arg5[%c0_8, %c0_9, %c0_10] : memref<1x8x2xf32, #tpu.memory_space<vmem>>, vector<1x8x1xf32>
    %22 = vector.shape_cast %21 : vector<1x8x1xf32> to vector<8x1xf32>
    %c0_11 = arith.constant 0 : index
    %23 = memref.load %arg3[%c0_11] : memref<2xf32, #tpu.memory_space<smem>>
    %24 = vector.broadcast %23 : f32 to vector<8x1xf32>
    %25 = arith.mulf %22, %24 : vector<8x1xf32>
    %c0_12 = arith.constant 0 : index
    %c0_13 = arith.constant 0 : index
    %c1 = arith.constant 1 : index
    %26 = vector.load %arg5[%c0_12, %c0_13, %c1] : memref<1x8x2xf32, #tpu.memory_space<vmem>>, vector<1x8x1xf32>
    %27 = vector.shape_cast %26 : vector<1x8x1xf32> to vector<8x1xf32>
    %c1_14 = arith.constant 1 : index
    %28 = memref.load %arg3[%c1_14] : memref<2xf32, #tpu.memory_space<smem>>
    %29 = vector.broadcast %28 : f32 to vector<8x1xf32>
    %30 = arith.mulf %27, %29 : vector<8x1xf32>
    %c0_15 = arith.constant 0 : index
    %c0_16 = arith.constant 0 : index
    %c0_17 = arith.constant 0 : index
    %31 = vector.load %arg7[%c0_15, %c0_16, %c0_17] : memref<1x2x128xf32, #tpu.memory_space<vmem>>, vector<1x1x128xf32>
    %32 = vector.shape_cast %31 : vector<1x1x128xf32> to vector<1x128xf32>
    %33 = vector.broadcast %25 : vector<8x1xf32> to vector<8x128xf32>
    %34 = vector.broadcast %32 : vector<1x128xf32> to vector<8x128xf32>
    %35 = arith.subf %33, %34 : vector<8x128xf32>
    %c0_18 = arith.constant 0 : index
    %c1_19 = arith.constant 1 : index
    %c0_20 = arith.constant 0 : index
    %36 = vector.load %arg7[%c0_18, %c1_19, %c0_20] : memref<1x2x128xf32, #tpu.memory_space<vmem>>, vector<1x1x128xf32>
    %37 = vector.shape_cast %36 : vector<1x1x128xf32> to vector<1x128xf32>
    %38 = vector.broadcast %30 : vector<8x1xf32> to vector<8x128xf32>
    %39 = vector.broadcast %37 : vector<1x128xf32> to vector<8x128xf32>
    %40 = arith.subf %38, %39 : vector<8x128xf32>
    %41 = arith.mulf %35, %35 : vector<8x128xf32>
    %42 = arith.mulf %40, %40 : vector<8x128xf32>
    %43 = arith.addf %41, %42 : vector<8x128xf32>
    %44 = math.sqrt %43 : vector<8x128xf32>
    %45 = arith.addf %44, %20 : vector<8x128xf32>
    %c0_21 = arith.constant 0 : index
    %c0_22 = arith.constant 0 : index
    %c0_23 = arith.constant 0 : index
    %46 = vector.load %arg8[%c0_21, %c0_22, %c0_23] : memref<1x8x128xf32, #tpu.memory_space<vmem>>, vector<1x8x128xf32>
    %47 = vector.shape_cast %46 : vector<1x8x128xf32> to vector<8x128xf32>
    %48 = vector.shape_cast %45 : vector<8x128xf32> to vector<1x8x128xf32>
    tpu.vector_store %arg8[%c0_21, %c0_22, %c0_23], %48 {strides = array<i32>} : memref<1x8x128xf32, #tpu.memory_space<vmem>>, vector<1x8x128xf32>,
    return
  }
  func.func @transform_0(%arg0: i32, %arg1: i32, %arg2: i32) -> i32 {
    %c0_i32 = arith.constant 0 : i32
    %c0_i32_0 = arith.constant 0 : i32
    return %c0_i32 : i32
  }
  func.func @transform_1(%arg0: i32, %arg1: i32, %arg2: i32) -> (i32, i32, i32) {
    %c0_i32 = arith.constant 0 : i32
    %c0_i32_0 = arith.constant 0 : i32
    return %arg0, %arg1, %c0_i32 : i32, i32, i32
  }
  func.func @transform_2(%arg0: i32, %arg1: i32, %arg2: i32) -> (i32, i32, i32) {
    %c0_i32 = arith.constant 0 : i32
    %c0_i32_0 = arith.constant 0 : i32
    return %arg0, %arg1, %c0_i32 : i32, i32, i32
  }
  func.func @transform_3(%arg0: i32, %arg1: i32, %arg2: i32) -> (i32, i32, i32) {
    %c0_i32 = arith.constant 0 : i32
    %c0_i32_0 = arith.constant 0 : i32
    return %arg0, %c0_i32, %arg2 : i32, i32, i32
  }
  func.func @transform_4(%arg0: i32, %arg1: i32, %arg2: i32) -> (i32, i32, i32) {
    %c0_i32 = arith.constant 0 : i32
    %c0_i32_0 = arith.constant 0 : i32
    return %arg0, %c0_i32, %arg2 : i32, i32, i32
  }
  func.func @transform_5(%arg0: i32, %arg1: i32, %arg2: i32) -> (i32, i32, i32) {
    %c0_i32 = arith.constant 0 : i32
    return %arg0, %arg1, %arg2 : i32, i32, i32
  }
}

</mosaic_0001>

<llo_original>
// kernel: tpu_custom_call.1
$region0: #{tpu_custom_call.1}
  #allocation0 [shape = 'u32[]', space=smem, size = 0x4, offset = 0x4, fixed_abs, tag = 'smem constant byte address 0x4 - core index']
  #allocation1 [shape = 'u32[144,128]{1,0:T(1,128)}', space=vmem, size = 0x12000, scoped, tag = 'internal scratch']
  %s0 = inlined_call_operand.vmem [shape: f32[2], index: 0, kind: input, shape index: {}]
  %s1 = inlined_call_operand.vmem [shape: f32[2,8,2], index: 1, kind: input, shape index: {}]
  %s2 = inlined_call_operand.vmem [shape: f32[2,8,2], index: 2, kind: input, shape index: {}]
  %s3 = inlined_call_operand.vmem [shape: f32[2,1,128], index: 3, kind: input, shape index: {}]
  %s4 = inlined_call_operand.vmem [shape: f32[2,2,128], index: 4, kind: input, shape index: {}]
  %s5 = inlined_call_operand.hbm [shape: f32[2,8,128], index: 5, kind: output, shape index: {}]
  %s6 = sld [smem:[#allocation0]]
  $region57: #{tpu_custom_call.1} parent=0
    _
  %s8 = ssub.s32 1, %s6
  %s9 = scalar_select 0, %s8, %s6
  $region1: #{tpu_custom_call.1} parent=0
    #allocation2 [shape = 'u8[512]{0}', space=smem, size = 0x200, scoped, tag = 'input window, operand 0, single buffered']
    #allocation3 [shape = 's32[2]{0}', space=sflag, size = 0x8, scoped, tag = 'scoped memory for tpu_custom_call.1']
    #allocation4 [shape = 's32[2]{0}', space=sflag, size = 0x8, scoped, tag = 'scoped memory for tpu_custom_call.1']
    #allocation5 [shape = 'u8[8192]{0}', space=vmem, size = 0x2000, scoped, tag = 'output window, operand 0']
    %10 = vsyncpa [#allocation4], 0
    %11 = vsyncpa [#allocation3], 0
    %s12 = scalar_lea.sflag [#allocation3], 1
    %13 = vsyncpa %s12, 0
    loop: start=0, step=1, limit=4
    $region2: #{tpu_custom_call.1} parent=1 // loop_pre_header
      _
    $region3: #{tpu_custom_call.1} parent=1 // loop_header
      %s15 = sphi 0, %s19
      %p16 = scmp.ge.s32.totalorder %s15, 4
      %s22 = sphi 0, %s41
      %s23 = sphi 0, %s37
      %s24 = sphi 0, %s33
      %s25 = sphi 0, %s22
      %s26 = sphi 0, %s23
      %s27 = sphi 0, %s24
      %s28 = sphi 0, %s25
      %s29 = sphi 0, %s26
      %s30 = sphi 0, %s27
      %s42 = sphi 0, %s42
      %s44 = sphi 0, %s42
      %s45 = sphi 0, %s44
      %s59 = sphi 0, %s45
      %s67 = sphi 0, %s69
      %s70 = sphi 0, %s67
      %s71 = sphi 0, %s70
      %s87 = sphi 0, %s71
      %s95 = sphi 0, %s97
      %s98 = sphi 0, %s95
      %s99 = sphi 0, %s98
      %s115 = sphi 0, %s99
      %s123 = sphi 0, %s125
      %s126 = sphi 0, %s123
      %s127 = sphi 0, %s126
      %s143 = sphi 0, %s127
      %s151 = sphi 0, %s153
      %s154 = sphi 0, %s151
      %s155 = sphi 0, %s154
      %s171 = sphi 0, %s155
      %s181 = sphi 0, %s183
      %s184 = sphi 0, %s181
      %s185 = sphi 0, %s184
      %s201 = sphi 0, %s185
    $region4: #{tpu_custom_call.1} parent=1 // loop_header_branch
      %18 = sbr.rel (%p16) target = $region8
    $region5: #{tpu_custom_call.1} parent=1 // loop_body
      %s20 = ssub.s32 %s15, 1
      %s21 = ssub.s32 %s15, 2
      %s31 = sadd.s32 1, %s24
      %p32 = scmp.ge.s32.totalorder %s31, 1
      %s33 = scalar_select %p32, 0, %s31
      %s34 = sadd.s32 1, %s23
      %s35 = scalar_select %p32, %s34, %s23
      %p36 = scmp.ge.s32.totalorder %s35, 1
      %s37 = scalar_select %p36, 0, %s35
      %s38 = sadd.s32 1, %s22
      %s39 = scalar_select %p36, %s38, %s22
      %p40 = scmp.ge.s32.totalorder %s39, 2
      %s41 = scalar_select %p40, 0, %s39
      %s43 = sadd.s32 %s42, 1
      %p46 = scmp.eq.s32.totalorder %s15, 1
      %p47 = scmp.ne.s32.totalorder %s42, %s44
      %p48 = scmp.eq.s32.totalorder %s15, 0
      %p49 = por %p47, %p48
      %p50 = scmp.ne.s32.totalorder %s42, %s44
      %p51 = scmp.eq.s32.totalorder %s20, 1
      %p52 = por %p50, %p51
      %p53 = scmp.ne.s32.totalorder %s44, %s45
      %p54 = scmp.eq.s32.totalorder %s20, 0
      %p55 = por %p53, %p54
      %p56 = scmp.ne.s32.totalorder %s44, %s45
      %p57 = scmp.eq.s32.totalorder %s21, 1
      %p58 = por %p56, %p57
      %p60 = scmp.ne.s32.totalorder %s45, %s59
      %p61 = scmp.eq.s32.totalorder %s21, 0
      %p62 = por %p60, %p61
      %s63 = ssub.s32 %s22, %s41
      %s64 = ssub.s32 %s23, %s37
      %s65 = sor.u32 %s63, %s64
      %p66 = scmp.eq.s32.totalorder %s65, 0
      %s68 = sadd.s32 %s67, 1
      %s69 = scalar_select %p66, %s67, %s68
      %p72 = pneg %p66
      %p73 = scmp.eq.s32.totalorder %s15, 1
      %p74 = por %p72, %p73
      %p75 = scmp.ne.s32.totalorder %s67, %s70
      %p76 = scmp.eq.s32.totalorder %s15, 0
      %p77 = por %p75, %p76
      %p78 = scmp.ne.s32.totalorder %s67, %s70
      %p79 = scmp.eq.s32.totalorder %s20, 1
      %p80 = por %p78, %p79
      %p81 = scmp.ne.s32.totalorder %s70, %s71
      %p82 = scmp.eq.s32.totalorder %s20, 0
      %p83 = por %p81, %p82
      %p84 = scmp.ne.s32.totalorder %s70, %s71
      %p85 = scmp.eq.s32.totalorder %s21, 1
      %p86 = por %p84, %p85
      %p88 = scmp.ne.s32.totalorder %s71, %s87
      %p89 = scmp.eq.s32.totalorder %s21, 0
      %p90 = por %p88, %p89
      %s91 = ssub.s32 %s22, %s41
      %s92 = ssub.s32 %s23, %s37
      %s93 = sor.u32 %s91, %s92
      %p94 = scmp.eq.s32.totalorder %s93, 0
      %s96 = sadd.s32 %s95, 1
      %s97 = scalar_select %p94, %s95, %s96
      %p100 = pneg %p94
      %p101 = scmp.eq.s32.totalorder %s15, 1
      %p102 = por %p100, %p101
      %p103 = scmp.ne.s32.totalorder %s95, %s98
      %p104 = scmp.eq.s32.totalorder %s15, 0
      %p105 = por %p103, %p104
      %p106 = scmp.ne.s32.totalorder %s95, %s98
      %p107 = scmp.eq.s32.totalorder %s20, 1
      %p108 = por %p106, %p107
      %p109 = scmp.ne.s32.totalorder %s98, %s99
      %p110 = scmp.eq.s32.totalorder %s20, 0
      %p111 = por %p109, %p110
      %p112 = scmp.ne.s32.totalorder %s98, %s99
      %p113 = scmp.eq.s32.totalorder %s21, 1
      %p114 = por %p112, %p113
      %p116 = scmp.ne.s32.totalorder %s99, %s115
      %p117 = scmp.eq.s32.totalorder %s21, 0
      %p118 = por %p116, %p117
      %s119 = ssub.s32 %s22, %s41
      %s120 = ssub.s32 %s24, %s33
      %s121 = sor.u32 %s119, %s120
      %p122 = scmp.eq.s32.totalorder %s121, 0
      %s124 = sadd.s32 %s123, 1
      %s125 = scalar_select %p122, %s123, %s124
      %p128 = pneg %p122
      %p129 = scmp.eq.s32.totalorder %s15, 1
      %p130 = por %p128, %p129
      %p131 = scmp.ne.s32.totalorder %s123, %s126
      %p132 = scmp.eq.s32.totalorder %s15, 0
      %p133 = por %p131, %p132
      %p134 = scmp.ne.s32.totalorder %s123, %s126
      %p135 = scmp.eq.s32.totalorder %s20, 1
      %p136 = por %p134, %p135
      %p137 = scmp.ne.s32.totalorder %s126, %s127
      %p138 = scmp.eq.s32.totalorder %s20, 0
      %p139 = por %p137, %p138
      %p140 = scmp.ne.s32.totalorder %s126, %s127
      %p141 = scmp.eq.s32.totalorder %s21, 1
      %p142 = por %p140, %p141
      %p144 = scmp.ne.s32.totalorder %s127, %s143
      %p145 = scmp.eq.s32.totalorder %s21, 0
      %p146 = por %p144, %p145
      %s147 = ssub.s32 %s22, %s41
      %s148 = ssub.s32 %s24, %s33
      %s149 = sor.u32 %s147, %s148
      %p150 = scmp.eq.s32.totalorder %s149, 0
      %s152 = sadd.s32 %s151, 1
      %s153 = scalar_select %p150, %s151, %s152
      %p156 = pneg %p150
      %p157 = scmp.eq.s32.totalorder %s15, 1
      %p158 = por %p156, %p157
      %p159 = scmp.ne.s32.totalorder %s151, %s154
      %p160 = scmp.eq.s32.totalorder %s15, 0
      %p161 = por %p159, %p160
      %p162 = scmp.ne.s32.totalorder %s151, %s154
      %p163 = scmp.eq.s32.totalorder %s20, 1
      %p164 = por %p162, %p163
      %p165 = scmp.ne.s32.totalorder %s154, %s155
      %p166 = scmp.eq.s32.totalorder %s20, 0
      %p167 = por %p165, %p166
      %p168 = scmp.ne.s32.totalorder %s154, %s155
      %p169 = scmp.eq.s32.totalorder %s21, 1
      %p170 = por %p168, %p169
      %p172 = scmp.ne.s32.totalorder %s155, %s171
      %p173 = scmp.eq.s32.totalorder %s21, 0
      %p174 = por %p172, %p173
      %s175 = ssub.s32 %s22, %s41
      %s176 = ssub.s32 %s23, %s37
      %s177 = sor.u32 %s175, %s176
      %s178 = ssub.s32 %s24, %s33
      %s179 = sor.u32 %s177, %s178
      %p180 = scmp.eq.s32.totalorder %s179, 0
      %s182 = sadd.s32 %s181, 1
      %s183 = scalar_select %p180, %s181, %s182
      %p186 = pneg %p180
      %p187 = scmp.eq.s32.totalorder %s15, 1
      %p188 = por %p186, %p187
      %p189 = scmp.ne.s32.totalorder %s181, %s184
      %p190 = scmp.eq.s32.totalorder %s15, 0
      %p191 = por %p189, %p190
      %p192 = scmp.ne.s32.totalorder %s181, %s184
      %p193 = scmp.eq.s32.totalorder %s20, 1
      %p194 = por %p192, %p193
      %p195 = scmp.ne.s32.totalorder %s184, %s185
      %p196 = scmp.eq.s32.totalorder %s20, 0
      %p197 = por %p195, %p196
      %p198 = scmp.ne.s32.totalorder %s184, %s185
      %p199 = scmp.eq.s32.totalorder %s21, 1
      %p200 = por %p198, %p199
      %p202 = scmp.ne.s32.totalorder %s185, %s201
      %p203 = scmp.eq.s32.totalorder %s21, 0
      %p204 = por %p202, %p203
      %p205 = scmp.le.s32.totalorder 1, %s15
      %p206 = scmp.lt.s32.totalorder %s15, 3
      %p207 = pnand %p205, %p206
      %p208 = pneg %p207
      // Predicated region
      $region9: #{tpu_custom_call.1} parent=5 // pred_check
        _
      $region10: #{tpu_custom_call.1} parent=5 // pred_check_branch
        %210 = sbr.rel (%p207) target = $region12
      $region11: #{tpu_custom_call.1} parent=5 // pred_region
        %s211 = ssub.s32 %s15, 1
        // Predicated region
        $region13: #{tpu_custom_call.1} parent=11 // pred_check
          %p212 = pneg %p55
        $region14: #{tpu_custom_call.1} parent=11 // pred_check_branch
          %214 = sbr.rel (%p212) target = $region16
        $region15: #{tpu_custom_call.1} parent=11 // pred_region
          %s216 = ssub.s32 16, 16
          %217 = vsyncadd [#allocation4], %s216
          %s219 = sshll.u32 %s0, 4
          %s220 = int_to_ptr.vmem [resolvable:$true] %s219
          %222 = dma.vmem_to_smem %s220, 16, [#allocation2], [#allocation4]
        $region16: #{tpu_custom_call.1} parent=11 // pred_fallthru
          _
      $region12: #{tpu_custom_call.1} parent=5 // pred_fallthru
        _
      %p223 = scmp.lt.s32.totalorder %s15, 2
      // Predicated region
      $region17: #{tpu_custom_call.1} parent=5 // pred_check
        %p224 = pneg %p223
      $region18: #{tpu_custom_call.1} parent=5 // pred_check_branch
        %226 = sbr.rel (%p224) target = $region20
      $region19: #{tpu_custom_call.1} parent=5 // pred_region
        // Predicated region
        $region21: #{tpu_custom_call.1} parent=19 // pred_check
          %p227 = pneg %p77
        $region22: #{tpu_custom_call.1} parent=19 // pred_check_branch
          %229 = sbr.rel (%p227) target = $region24
        $region23: #{tpu_custom_call.1} parent=19 // pred_region
          %p230 = scmp.lt.s32.totalorder %s22, 1
          %s231 = scalar_select %p230, %s22, 1
          %p232 = scmp.lt.s32.totalorder %s23, 0
          %s233 = scalar_select %p232, %s23, 0
          %s234 = sadd.s32 %s233, %s231
          %s235 = smul.addr %s234, 8
          %s236 = scalar_lea.vmem %s1, %s235
        $region24: #{tpu_custom_call.1} parent=19 // pred_fallthru
          _
        // Predicated region
        $region25: #{tpu_custom_call.1} parent=19 // pred_check
          %p237 = pneg %p105
        $region26: #{tpu_custom_call.1} parent=19 // pred_check_branch
          %239 = sbr.rel (%p237) target = $region28
        $region27: #{tpu_custom_call.1} parent=19 // pred_region
          %p240 = scmp.lt.s32.totalorder %s22, 1
          %s241 = scalar_select %p240, %s22, 1
          %p242 = scmp.lt.s32.totalorder %s23, 0
          %s243 = scalar_select %p242, %s23, 0
          %s244 = sadd.s32 %s243, %s241
          %s245 = smul.addr %s244, 8
          %s246 = scalar_lea.vmem %s2, %s245
        $region28: #{tpu_custom_call.1} parent=19 // pred_fallthru
          _
        // Predicated region
        $region29: #{tpu_custom_call.1} parent=19 // pred_check
          %p247 = pneg %p133
        $region30: #{tpu_custom_call.1} parent=19 // pred_check_branch
          %249 = sbr.rel (%p247) target = $region32
        $region31: #{tpu_custom_call.1} parent=19 // pred_region
          %p250 = scmp.lt.s32.totalorder %s22, 1
          %s251 = scalar_select %p250, %s22, 1
          %p252 = scmp.lt.s32.totalorder %s24, 0
          %s253 = scalar_select %p252, %s24, 0
          %s254 = sadd.s32 %s253, %s251
          %s255 = scalar_lea.vmem %s3, %s254
        $region32: #{tpu_custom_call.1} parent=19 // pred_fallthru
          _
        // Predicated region
        $region33: #{tpu_custom_call.1} parent=19 // pred_check
          %p256 = pneg %p161
        $region34: #{tpu_custom_call.1} parent=19 // pred_check_branch
          %258 = sbr.rel (%p256) target = $region36
        $region35: #{tpu_custom_call.1} parent=19 // pred_region
          %p259 = scmp.lt.s32.totalorder %s22, 1
          %s260 = scalar_select %p259, %s22, 1
          %p261 = scmp.lt.s32.totalorder %s24, 0
          %s262 = scalar_select %p261, %s24, 0
          %s263 = sadd.s32 %s262, %s260
          %s264 = smul.addr %s263, 2
          %s265 = scalar_lea.vmem %s4, %s264
        $region36: #{tpu_custom_call.1} parent=19 // pred_fallthru
          _
      $region20: #{tpu_custom_call.1} parent=5 // pred_fallthru
        _
      %p266 = scmp.le.s32.totalorder 1, %s15
      %p267 = scmp.lt.s32.totalorder %s15, 3
      %p268 = pnand %p266, %p267
      %p269 = pneg %p268
      // Predicated region
      $region37: #{tpu_custom_call.1} parent=5 // pred_check
        _
      $region38: #{tpu_custom_call.1} parent=5 // pred_check_branch
        %271 = sbr.rel (%p268) target = $region40
      $region39: #{tpu_custom_call.1} parent=5 // pred_region
        %s272 = ssub.s32 %s15, 1
        // Predicated region
        $region41: #{tpu_custom_call.1} parent=39 // pred_check
          %p273 = pneg %p55
        $region42: #{tpu_custom_call.1} parent=39 // pred_check_branch
          %275 = sbr.rel (%p273) target = $region44
        $region43: #{tpu_custom_call.1} parent=39 // pred_region
          %276 = dma.done [#allocation4], 16
        $region44: #{tpu_custom_call.1} parent=39 // pred_fallthru
          _
        %277 = sfence
        %p278 = pneg %p55
        %p279 = pneg %p52
        %p280 = scmp.lt.s32.totalorder %s25, 1
        %s281 = scalar_select %p280, %s25, 1
        %p282 = scmp.lt.s32.totalorder %s26, 0
        %s283 = scalar_select %p282, %s26, 0
        %s284 = sadd.s32 %s283, %s281
        %s285 = smul.addr %s284, 8
        %s286 = scalar_lea.vmem %s1, %s285
        %p287 = pneg %p83
        %p288 = pneg %p80
        %p289 = scmp.lt.s32.totalorder %s25, 1
        %s290 = scalar_select %p289, %s25, 1
        %p291 = scmp.lt.s32.totalorder %s26, 0
        %s292 = scalar_select %p291, %s26, 0
        %s293 = sadd.s32 %s292, %s290
        %s294 = smul.addr %s293, 8
        %s295 = scalar_lea.vmem %s2, %s294
        %p296 = pneg %p111
        %p297 = pneg %p108
        %p298 = scmp.lt.s32.totalorder %s25, 1
        %s299 = scalar_select %p298, %s25, 1
        %p300 = scmp.lt.s32.totalorder %s27, 0
        %s301 = scalar_select %p300, %s27, 0
        %s302 = sadd.s32 %s301, %s299
        %s303 = scalar_lea.vmem %s3, %s302
        %p304 = pneg %p139
        %p305 = pneg %p136
        %p306 = scmp.lt.s32.totalorder %s25, 1
        %s307 = scalar_select %p306, %s25, 1
        %p308 = scmp.lt.s32.totalorder %s27, 0
        %s309 = scalar_select %p308, %s27, 0
        %s310 = sadd.s32 %s309, %s307
        %s311 = smul.addr %s310, 2
        %s312 = scalar_lea.vmem %s4, %s311
        %p313 = pneg %p167
        %p314 = pneg %p164
        %p315 = pneg %p197
        %p316 = pneg %p194
        %s317 = sand.u32 %s184, 1
        %s318 = scalar_lea.sflag [#allocation3], %s317
        %s319 = sand.u32 %s184, 1
        %s320 = smul.addr %s319, 8
        %s321 = scalar_lea.vmem [#allocation5], %s320
        %p322 = scmp.lt.s32.totalorder %s25, 1
        %s323 = scalar_select %p322, %s25, 1
        %p324 = scmp.lt.s32.totalorder %s26, 0
        %s325 = scalar_select %p324, %s26, 0
        %s326 = sadd.s32 %s325, %s323
        %s327 = smul.addr %s326, 8
        %s328 = scalar_lea.vmem %s1, %s327
        %p329 = scmp.lt.s32.totalorder %s25, 1
        %s330 = scalar_select %p329, %s25, 1
        %p331 = scmp.lt.s32.totalorder %s26, 0
        %s332 = scalar_select %p331, %s26, 0
        %s333 = sadd.s32 %s332, %s330
        %s334 = smul.addr %s333, 8
        %s335 = scalar_lea.vmem %s2, %s334
        %p336 = scmp.lt.s32.totalorder %s25, 1
        %s337 = scalar_select %p336, %s25, 1
        %p338 = scmp.lt.s32.totalorder %s27, 0
        %s339 = scalar_select %p338, %s27, 0
        %s340 = sadd.s32 %s339, %s337
        %s341 = scalar_lea.vmem %s3, %s340
        %p342 = scmp.lt.s32.totalorder %s25, 1
        %s343 = scalar_select %p342, %s25, 1
        %p344 = scmp.lt.s32.totalorder %s27, 0
        %s345 = scalar_select %p344, %s27, 0
        %s346 = sadd.s32 %s345, %s343
        %s347 = smul.addr %s346, 2
        %s348 = scalar_lea.vmem %s4, %s347
        %v349 = vld [vmem:[%s328] sm:$0xff]
        %351 = vrot.lane.b32.xlu0 %v349, 1
        %v352 = vpop.permute.xlu0 %351
        %v354 = vsub.f32 %v349, %v352
        %v355 = vmul.f32 %v354, 0.5
        %v356 = vtanh.pop %v355
        %v357 = vsub.f32 1.0, %v356
        %v358 = vmul.f32 %v357, -0.5
        %v359 = vmul.f32 %v356, -1.0
        %v360 = vld [vmem:[%s341] sm:$0x1]
        %362 = vset.pattern.permute.xlu0 1
        %363 = vperm.xlu0 %362, %v359
        %v364 = vpop.permute.xlu0 %363
        %v367 = vlaneseq
        %v368 = vshrl.u32 %v367, 7
        %v369 = vsub.s32 0, %v368
        %v370 = vrot.slane %v360, %v369
        %v372 = vmul.f32 %v364, %v370
        %374 = vset.pattern.permute.xlu0 1
        %375 = vperm.xlu0 %374, %v358
        %v376 = vpop.permute.xlu0 %375
        %v378 = vadd.f32 %v376, %v372
        %v379 = vld [vmem:[%s335] sm:$0xff]
        %s380 = sld [smem:[#allocation2]]
        %v381 = vstv %s380
        %v382 = vmul.f32 %v379, %v381
        %s383 = sld [smem:[#allocation2 + $0x1]]
        %v384 = vstv %s383
        %v385 = vmul.f32 %v379, %v384
        %v386 = vld [vmem:[%s348] sm:$0x1]
        %388 = vset.pattern.permute.xlu0 0
        %389 = vperm.xlu0 %388, %v382
        %v390 = vpop.permute.xlu0 %389
        %v392 = vlaneseq
        %v393 = vshrl.u32 %v392, 7
        %v394 = vsub.s32 0, %v393
        %v395 = vrot.slane %v386, %v394
        %v396 = vsub.f32 %v390, %v395
        %v397 = vld [vmem:[%s348 + $0x1] sm:$0x1]
        %399 = vset.pattern.permute.xlu0 1
        %400 = vperm.xlu0 %399, %v385
        %v401 = vpop.permute.xlu0 %400
        %v403 = vlaneseq
        %v404 = vshrl.u32 %v403, 7
        %v405 = vsub.s32 0, %v404
        %v406 = vrot.slane %v397, %v405
        %v407 = vsub.f32 %v401, %v406
        %v408 = vmul.f32 %v396, %v396
        %v409 = vmul.f32 %v407, %v407
        %v410 = vadd.f32 %v408, %v409
        %v411 = vrsqrt.pop %v410
        %v412 = vmul.f32 %v410, %v411
        %vm413 = vcmp.eq.f32.partialorder %v410, inf
        %v414 = vsel %vm413, %v410, %v412
        %vm415 = vcmp.eq.f32.partialorder %v410, 0.0
        %v416 = vand.u32 %v410, 2147483648
        %v417 = vsel %vm415, %v416, %v414
        %v418 = vadd.f32 %v417, %v378
        %419 = vst [vmem:[%s321] sm:$0xff] %v418
        %s420 = sand.u32 %s184, 1
        %s421 = scalar_lea.sflag [#allocation3], %s420
        %s422 = sand.u32 %s184, 1
        %s423 = smul.addr %s422, 8
        %s424 = scalar_lea.vmem [#allocation5], %s423
        // Predicated region
        $region45: #{tpu_custom_call.1} parent=39 // pred_check
          %p425 = pneg %p194
        $region46: #{tpu_custom_call.1} parent=39 // pred_check_branch
          %427 = sbr.rel (%p425) target = $region48
        $region47: #{tpu_custom_call.1} parent=39 // pred_region
          %s429 = ssub.s32 128, 128
          %430 = vsyncadd %s421, %s429
          %s431 = sadd.s32 %s27, %s26
          %s432 = sadd.s32 %s431, %s25
          %s433 = smul.addr %s432, 128
          %s434 = scalar_lea.hbm %s5, %s433
          %s436 = sshll.u32 %s424, 4
          %s437 = int_to_ptr.vmem [resolvable:$true] %s436
          %439 = dma.vmem_to_hbm [thread:$0]  %s437, 128, %s434, %s421
        $region48: #{tpu_custom_call.1} parent=39 // pred_fallthru
          _
      $region40: #{tpu_custom_call.1} parent=5 // pred_fallthru
        _
      %p440 = scmp.le.s32.totalorder 2, %s15
      // Predicated region
      $region49: #{tpu_custom_call.1} parent=5 // pred_check
        %p441 = pneg %p440
      $region50: #{tpu_custom_call.1} parent=5 // pred_check_branch
        %443 = sbr.rel (%p441) target = $region52
      $region51: #{tpu_custom_call.1} parent=5 // pred_region
        %s444 = ssub.s32 %s15, 2
        // Predicated region
        $region53: #{tpu_custom_call.1} parent=51 // pred_check
          %p445 = pneg %p200
        $region54: #{tpu_custom_call.1} parent=51 // pred_check_branch
          %447 = sbr.rel (%p445) target = $region56
        $region55: #{tpu_custom_call.1} parent=51 // pred_region
          %s448 = sand.u32 %s185, 1
          %s449 = scalar_lea.sflag [#allocation3], %s448
          %s450 = sand.u32 %s185, 1
          %s451 = smul.addr %s450, 8
          %s452 = scalar_lea.vmem [#allocation5], %s451
          %453 = dma.done %s449, 128
        $region56: #{tpu_custom_call.1} parent=51 // pred_fallthru
          _
      $region52: #{tpu_custom_call.1} parent=5 // pred_fallthru
        _
    $region6: #{tpu_custom_call.1} parent=1 // loop_footer
      %s19 = sadd.s32 1, %s15
    $region7: #{tpu_custom_call.1} parent=1 // loop_footer_branch
      %14 = sbr.rel target = $region3
    $region8: #{tpu_custom_call.1} parent=1 // loop_exit
      _
    %454 = vsyncpa [#allocation3], 1
    %s455 = scalar_lea.sflag [#allocation3], 1
    %456 = vsyncpa %s455, 1
    %457 = vsyncpa [#allocation4], 1
    %s458 = scalar_lea.sflag [#allocation4], 1
    %459 = vsyncpa %s458, 1

</llo_original>
